<compile_context>
chip_gen: v7x
topology: tpu7x:2x2x1
jax: 0.10.0
libtpu: 0.0.40
codegen_flags: <defaults>
</compile_context>

<pallas_src>
import functools

import jax
import jax.numpy as jnp
from jax.experimental import pallas as pl
from jax.experimental.pallas import tpu as pltpu


def _round_up(x, m):
    return ((x + m - 1) // m) * m


# ---------------------------------------------------------------------------
# Kernel 1: implicit-GEMM conv + fused partial BatchNorm statistics.
# grid = (M_pad // tm,), purely "parallel" — the 4-tap reduction is unrolled
# in-kernel so every input byte is fetched from HBM exactly once.
# ---------------------------------------------------------------------------
def _conv_stats_kernel(x_ref, halo_ref, w_ref, mask_ref, y_ref, stats_ref,
                       *, tap_offsets):
    tm = x_ref.shape[0]
    c_pad = w_ref.shape[2]

    # In-VMEM "im2col": the taps are constant-row-offset windows of the
    # concatenated (main + halo) block.  Slice on an f32 value (plain 8x128
    # tiling) and cast to bf16 right before the MXU.
    xcat = jnp.concatenate([x_ref[...], halo_ref[...]], axis=0).astype(jnp.float32)

    acc = jnp.zeros((tm, c_pad), jnp.float32)
    for t, off in enumerate(tap_offsets):
        lhs = jax.lax.slice_in_dim(xcat, off, off + tm, axis=0).astype(jnp.bfloat16)
        acc = acc + jnp.dot(lhs, w_ref[t], preferred_element_type=jnp.float32)

    # bf16 intermediate y (halves the conv-output HBM round trip).
    y_ref[...] = acc.astype(y_ref.dtype)

    # Fused BN partial statistics from the f32 accumulator, garbage rows masked.
    masked = acc * mask_ref[...]                           # (tm, 1) broadcast
    s = jnp.sum(masked, axis=0, keepdims=True)             # (1, Cp)
    ss = jnp.sum(masked * acc, axis=0, keepdims=True)      # (1, Cp)
    row = jax.lax.broadcasted_iota(jnp.int32, (8, c_pad), 0)
    stats_ref[...] = jnp.where(row == 0, s, jnp.where(row == 1, ss, 0.0))


def conv_matmul_with_stats(x_flat, w2, mask, *, tm, h_halo, tap_offsets):
    m_rows, c4 = x_flat.shape
    m_pad = m_rows - h_halo
    _, _, c_pad = w2.shape
    grid_m = m_pad // tm
    ratio = tm // h_halo          # h_halo divides tm by construction

    kernel = functools.partial(_conv_stats_kernel, tap_offsets=tap_offsets)
    return pl.pallas_call(
        kernel,
        out_shape=(
            jax.ShapeDtypeStruct((m_pad, c_pad), jnp.bfloat16),
            jax.ShapeDtypeStruct((grid_m * 8, c_pad), jnp.float32),
        ),
        grid_spec=pltpu.PrefetchScalarGridSpec(
            num_scalar_prefetch=0,
            grid=(grid_m,),
            in_specs=[
                pl.BlockSpec((tm, c4), lambda i: (i, 0)),                  # main rows
                pl.BlockSpec((h_halo, c4), lambda i: ((i + 1) * ratio, 0)),  # halo rows
                pl.BlockSpec((4, c4, c_pad), lambda i: (0, 0, 0)),         # weight, resident
                pl.BlockSpec((tm, 1), lambda i: (i, 0)),                   # validity mask
            ],
            out_specs=(
                pl.BlockSpec((tm, c_pad), lambda i: (i, 0)),
                pl.BlockSpec((8, c_pad), lambda i: (i, 0)),
            ),
        ),
        compiler_params=pltpu.CompilerParams(
            dimension_semantics=("parallel",),
            # Above the 32 MiB default (v5e/v6e: 128 MiB physical) while keeping
            # headroom on v7x's 64 MiB VMEM.
            vmem_limit_bytes=48 * 1024 * 1024,
        ),
    )(x_flat, x_flat, w2, mask)


# ---------------------------------------------------------------------------
# Kernel 2: fused per-channel affine (precomputed BN scale/shift) + LeakyReLU,
# lane-dense (tm, Cout_pad) tiles, bf16 input / f32 output.
# ---------------------------------------------------------------------------
def _bn_lrelu_kernel(y_ref, scale_ref, shift_ref, o_ref, *, slope):
    v = y_ref[...].astype(jnp.float32) * scale_ref[...] + shift_ref[...]
    o_ref[...] = jnp.where(v >= 0, v, slope * v)


def bn_leaky_relu(y, scale, shift, *, tm, slope=0.2):
    m_pad, c_pad = y.shape
    kernel = functools.partial(_bn_lrelu_kernel, slope=slope)
    return pl.pallas_call(
        kernel,
        out_shape=jax.ShapeDtypeStruct((m_pad, c_pad), jnp.float32),
        grid_spec=pltpu.PrefetchScalarGridSpec(
            num_scalar_prefetch=0,
            grid=(m_pad // tm,),
            in_specs=[
                pl.BlockSpec((tm, c_pad), lambda i: (i, 0)),
                pl.BlockSpec((1, c_pad), lambda i: (0, 0)),
                pl.BlockSpec((1, c_pad), lambda i: (0, 0)),
            ],
            out_specs=pl.BlockSpec((tm, c_pad), lambda i: (i, 0)),
        ),
        compiler_params=pltpu.CompilerParams(
            dimension_semantics=("parallel",),
            vmem_limit_bytes=48 * 1024 * 1024,
        ),
    )(y, scale, shift)


# ---------------------------------------------------------------------------
# Wrapper: cheap layout glue (no im2col), Pallas conv+stats, tiny per-channel
# stat reduction, Pallas normalize+act, boundary reshape back to NCHW.
# ---------------------------------------------------------------------------
def conv2d_block_forward(x, weight, gamma, beta, *, stride=2, padding=1,
                         eps=1e-5, slope=0.2):
    """x: (N, C_in, H, W), weight: (C_out, C_in, 4, 4) -> (N, C_out, Ho, Wo)."""
    n, cin, h, w = x.shape
    cout, _, kh, kw = weight.shape
    if not (kh == 4 and kw == 4 and stride == 2 and padding == 1
            and h % 2 == 0 and w % 2 == 0):
        # TODO(synk): generalize the space-to-depth tap decomposition to the
        # downsampling_factor variants (kernel=2d, stride=d, padding=d//2).
        raise NotImplementedError("only kernel=4, stride=2, padding=1 supported")

    ho = (h + 2 * padding - kh) // stride + 1
    wo = (w + 2 * padding - kw) // stride + 1
    hp, wp = h + 2 * padding, w + 2 * padding
    rr, cc = hp // 2, wp // 2          # = Ho + 1, Wo + 1
    c4 = 4 * cin                       # per-tap contraction depth (NOT padded)
    c_pad = _round_up(cout, 128)       # lane-dense output channels

    # --- O(input) layout glue in XLA (no im2col blow-up) ---------------------
    x_nhwc = jnp.transpose(x, (0, 2, 3, 1))
    x_p = jnp.pad(x_nhwc, ((0, 0), (padding, padding), (padding, padding), (0, 0)))
    # space-to-depth by the stride: x_sd[n, r, c, (pi, pj, ci)] = x_p[n, 2r+pi, 2c+pj, ci]
    x_sd = x_p.reshape(n, rr, 2, cc, 2, cin)
    x_sd = jnp.transpose(x_sd, (0, 1, 3, 2, 4, 5)).reshape(n, rr, cc, c4)

    m_wide = n * rr * cc               # wide (garbage-including) output rows
    m_true = n * ho * wo               # valid output positions (BN divisor)
    tap_offsets = (0, 1, cc, cc + 1)   # row offsets of the 4 taps (t = 2a + b)

    # Tile sizes: the halo must cover the largest tap offset and divide tm.
    h_halo = _round_up(cc + 2, 8)
    tm = h_halo * max(1, min(1024, _round_up(m_wide, h_halo)) // h_halo)
    m_pad = _round_up(m_wide, tm)
    grid_m = m_pad // tm

    x_flat = x_sd.reshape(m_wide, c4).astype(jnp.bfloat16)
    x_flat = jnp.pad(x_flat, ((0, m_pad + h_halo - m_wide), (0, 0)))

    # weight (Cout, Cin, 4, 4) -> (tap=2a+b, c4=(pi,pj,ci), Cout_pad), matching x_sd.
    w2 = weight.reshape(cout, cin, 2, 2, 2, 2)            # (co, ci, a, pi, b, pj)
    w2 = jnp.transpose(w2, (2, 4, 3, 5, 1, 0))            # (a, b, pi, pj, ci, co)
    w2 = w2.reshape(4, c4, cout)
    w2 = jnp.pad(w2, ((0, 0), (0, 0), (0, c_pad - cout))).astype(jnp.bfloat16)

    # Validity mask over wide output rows (garbage cols/rows + M padding -> 0).
    g = jnp.arange(m_pad, dtype=jnp.int32)
    local = g % (rr * cc)
    valid = (g < m_wide) & ((local // cc) < ho) & ((local % cc) < wo)
    mask = valid.astype(jnp.float32).reshape(m_pad, 1)

    # --- Pallas kernel 1: implicit-GEMM conv + fused partial BN statistics ---
    y, stats = conv_matmul_with_stats(x_flat, w2, mask, tm=tm, h_halo=h_halo,
                                      tap_offsets=tap_offsets)

    # Tiny per-channel reduction of the per-tile partials (O(grid_m * Cout)).
    stats = stats.reshape(grid_m, 8, c_pad)
    sum_c = jnp.sum(stats[:, 0, :], axis=0)
    sumsq_c = jnp.sum(stats[:, 1, :], axis=0)
    mean = sum_c / m_true
    var = jnp.maximum(sumsq_c / m_true - mean * mean, 0.0)   # biased (training) var
    # Padded Cout lanes: y == 0 and var == 0 -> scale ~ 1/sqrt(eps); they stay
    # exactly 0 through the affine and are sliced off below (intentional).
    gamma_p = jnp.pad(gamma.astype(jnp.float32), (0, c_pad - cout),
                      constant_values=1.0)
    beta_p = jnp.pad(beta.astype(jnp.float32), (0, c_pad - cout))
    scale_v = gamma_p * jax.lax.rsqrt(var + eps)
    shift_v = beta_p - mean * scale_v

    # --- Pallas kernel 2: lane-dense y*scale + shift -> LeakyReLU ------------
    tm2 = tm
    for k2 in range(max(1, min(grid_m, 2048 // tm)), 0, -1):
        if grid_m % k2 == 0:
            tm2 = tm * k2
            break
    out = bn_leaky_relu(y, scale_v.reshape(1, c_pad), shift_v.reshape(1, c_pad),
                        tm=tm2, slope=slope)

    # Boundary conversion back to PyTorch NCHW, dropping garbage rows/cols.
    out = out[:m_wide].reshape(n, rr, cc, c_pad)[:, :ho, :wo, :cout]
    return jnp.transpose(out, (0, 3, 1, 2))


if __name__ == "__main__":
    # Small shapes consistent with the module: N=2, C_in=4, H=W=16, C_out=8.
    N, Cin, H, W = 2, 4, 16, 16
    Cout, K = 8, 4

    key = jax.random.PRNGKey(0)
    kx, kw_ = jax.random.split(key)
    x = jax.random.normal(kx, (N, Cin, H, W), dtype=jnp.float32)
    weight = 0.1 * jax.random.normal(kw_, (Cout, Cin, K, K), dtype=jnp.float32)
    gamma = jnp.ones((Cout,), dtype=jnp.float32)    # BatchNorm2d weight init
    beta = jnp.zeros((Cout,), dtype=jnp.float32)    # BatchNorm2d bias init

    out = conv2d_block_forward(x, weight, gamma, beta, stride=2, padding=1)
    out = jax.block_until_ready(out)
    assert out.shape == (N, Cout, H // 2, W // 2)
    assert out.dtype == jnp.float32

    # Pure-JAX reference: Conv2d -> training-mode BatchNorm2d -> LeakyReLU(0.2).
    y_ref = jax.lax.conv_general_dilated(
        x, weight, window_strides=(2, 2), padding=((1, 1), (1, 1)),
        dimension_numbers=("NCHW", "OIHW", "NCHW"))
    mu = jnp.mean(y_ref, axis=(0, 2, 3), keepdims=True)
    va = jnp.var(y_ref, axis=(0, 2, 3), keepdims=True)
    y_n = (y_ref - mu) * jax.lax.rsqrt(va + 1e-5)
    y_n = y_n * gamma.reshape(1, -1, 1, 1) + beta.reshape(1, -1, 1, 1)
    ref = jnp.where(y_n >= 0, y_n, 0.2 * y_n)
    err = float(jnp.max(jnp.abs(out - ref)))
    assert err < 0.1, f"max abs error vs reference: {err}"  # bf16 conv tolerance

    print("KERNEL_OK")
</pallas_src>

<mosaic_0001>
module attributes {stable_mosaic.version = 11 : i64} {
  func.func @_conv_stats_kernel(%arg0: i32, %arg1: memref<176x16xbf16, #tpu.memory_space<vmem>>, %arg2: memref<16x16xbf16, #tpu.memory_space<vmem>>, %arg3: memref<4x16x128xbf16, #tpu.memory_space<vmem>>, %arg4: memref<176x1xf32, #tpu.memory_space<vmem>>, %arg5: memref<176x128xbf16, #tpu.memory_space<vmem>>, %arg6: memref<8x128xf32, #tpu.memory_space<vmem>>) attributes {dimension_semantics = [#tpu.dimension_semantics<parallel>], iteration_bounds = array<i64: 1>, scalar_prefetch = 0 : i64, scratch_operands = 0 : i64, tpu.core_type = #tpu.core_type<tc>, window_params = [{transform_indices = @transform_0, window_bounds = array<i64: 176, 16>}, {transform_indices = @transform_1, window_bounds = array<i64: 16, 16>}, {pipeline_mode = #tpu.pipeline_mode<synchronous>, transform_indices = @transform_2, window_bounds = array<i64: 4, 16, 128>}, {transform_indices = @transform_3, window_bounds = array<i64: 176, 1>}, {transform_indices = @transform_4, window_bounds = array<i64: 176, 128>}, {transform_indices = @transform_5, window_bounds = array<i64: 8, 128>}]} {
    %c0 = arith.constant 0 : index
    %c0_0 = arith.constant 0 : index
    %0 = vector.load %arg1[%c0, %c0_0] : memref<176x16xbf16, #tpu.memory_space<vmem>>, vector<176x16xbf16>
    %c0_1 = arith.constant 0 : index
    %c0_2 = arith.constant 0 : index
    %1 = vector.load %arg2[%c0_1, %c0_2] : memref<16x16xbf16, #tpu.memory_space<vmem>>, vector<16x16xbf16>
    %2 = tpu.concatenate %0, %1 in 0 : vector<176x16xbf16>, vector<16x16xbf16> -> vector<192x16xbf16>
    %3 = arith.extf %2 : vector<192x16xbf16> to vector<192x16xf32>
    %cst = arith.constant 0.000000e+00 : f32
    %4 = vector.broadcast %cst : f32 to vector<176x128xf32>
    %5 = vector.extract_strided_slice %3 {offsets = [0, 0], sizes = [176, 16], strides = [1, 1]} : vector<192x16xf32> to vector<176x16xf32>
    %6 = arith.truncf %5 : vector<176x16xf32> to vector<176x16xbf16>
    %c0_3 = arith.constant 0 : index
    %c0_4 = arith.constant 0 : index
    %c0_5 = arith.constant 0 : index
    %7 = vector.load %arg3[%c0_3, %c0_4, %c0_5] : memref<4x16x128xbf16, #tpu.memory_space<vmem>>, vector<1x16x128xbf16>
    %8 = vector.shape_cast %7 : vector<1x16x128xbf16> to vector<16x128xbf16>
    %cst_6 = arith.constant dense<0.000000e+00> : vector<176x128xf32>
    %9 = tpu.matmul %6, %8, %cst_6 {dimension_numbers = #tpu.dot_dimension_numbers<[1], [0], [0], [1], [0, 0, 1, 1], [], []>} : vector<176x16xbf16>, vector<16x128xbf16>, vector<176x128xf32> -> vector<176x128xf32>
    %10 = arith.addf %4, %9 : vector<176x128xf32>
    %11 = vector.extract_strided_slice %3 {offsets = [1, 0], sizes = [176, 16], strides = [1, 1]} : vector<192x16xf32> to vector<176x16xf32>
    %12 = arith.truncf %11 : vector<176x16xf32> to vector<176x16xbf16>
    %c1 = arith.constant 1 : index
    %c0_7 = arith.constant 0 : index
    %c0_8 = arith.constant 0 : index
    %13 = vector.load %arg3[%c1, %c0_7, %c0_8] : memref<4x16x128xbf16, #tpu.memory_space<vmem>>, vector<1x16x128xbf16>
    %14 = vector.shape_cast %13 : vector<1x16x128xbf16> to vector<16x128xbf16>
    %cst_9 = arith.constant dense<0.000000e+00> : vector<176x128xf32>
    %15 = tpu.matmul %12, %14, %cst_9 {dimension_numbers = #tpu.dot_dimension_numbers<[1], [0], [0], [1], [0, 0, 1, 1], [], []>} : vector<176x16xbf16>, vector<16x128xbf16>, vector<176x128xf32> -> vector<176x128xf32>
    %16 = arith.addf %10, %15 : vector<176x128xf32>
    %17 = vector.extract_strided_slice %3 {offsets = [9, 0], sizes = [176, 16], strides = [1, 1]} : vector<192x16xf32> to vector<176x16xf32>
    %18 = arith.truncf %17 : vector<176x16xf32> to vector<176x16xbf16>
    %c2 = arith.constant 2 : index
    %c0_10 = arith.constant 0 : index
    %c0_11 = arith.constant 0 : index
    %19 = vector.load %arg3[%c2, %c0_10, %c0_11] : memref<4x16x128xbf16, #tpu.memory_space<vmem>>, vector<1x16x128xbf16>
    %20 = vector.shape_cast %19 : vector<1x16x128xbf16> to vector<16x128xbf16>
    %cst_12 = arith.constant dense<0.000000e+00> : vector<176x128xf32>
    %21 = tpu.matmul %18, %20, %cst_12 {dimension_numbers = #tpu.dot_dimension_numbers<[1], [0], [0], [1], [0, 0, 1, 1], [], []>} : vector<176x16xbf16>, vector<16x128xbf16>, vector<176x128xf32> -> vector<176x128xf32>
    %22 = arith.addf %16, %21 : vector<176x128xf32>
    %23 = vector.extract_strided_slice %3 {offsets = [10, 0], sizes = [176, 16], strides = [1, 1]} : vector<192x16xf32> to vector<176x16xf32>
    %24 = arith.truncf %23 : vector<176x16xf32> to vector<176x16xbf16>
    %c3 = arith.constant 3 : index
    %c0_13 = arith.constant 0 : index
    %c0_14 = arith.constant 0 : index
    %25 = vector.load %arg3[%c3, %c0_13, %c0_14] : memref<4x16x128xbf16, #tpu.memory_space<vmem>>, vector<1x16x128xbf16>
    %26 = vector.shape_cast %25 : vector<1x16x128xbf16> to vector<16x128xbf16>
    %cst_15 = arith.constant dense<0.000000e+00> : vector<176x128xf32>
    %27 = tpu.matmul %24, %26, %cst_15 {dimension_numbers = #tpu.dot_dimension_numbers<[1], [0], [0], [1], [0, 0, 1, 1], [], []>} : vector<176x16xbf16>, vector<16x128xbf16>, vector<176x128xf32> -> vector<176x128xf32>
    %28 = arith.addf %22, %27 : vector<176x128xf32>
    %29 = arith.truncf %28 : vector<176x128xf32> to vector<176x128xbf16>
    %c0_16 = arith.constant 0 : index
    %c0_17 = arith.constant 0 : index
    %30 = vector.load %arg5[%c0_16, %c0_17] : memref<176x128xbf16, #tpu.memory_space<vmem>>, vector<176x128xbf16>
    tpu.vector_store %arg5[%c0_16, %c0_17], %29 {strides = array<i32>} : memref<176x128xbf16, #tpu.memory_space<vmem>>, vector<176x128xbf16>,
    %c0_18 = arith.constant 0 : index
    %c0_19 = arith.constant 0 : index
    %31 = vector.load %arg4[%c0_18, %c0_19] : memref<176x1xf32, #tpu.memory_space<vmem>>, vector<176x1xf32>
    %32 = vector.broadcast %31 : vector<176x1xf32> to vector<176x128xf32>
    %33 = arith.mulf %28, %32 : vector<176x128xf32>
    %cst_20 = arith.constant dense<0.000000e+00> : vector<128xf32>
    %34 = vector.multi_reduction <add>, %33, %cst_20 [0] : vector<176x128xf32> to vector<128xf32>
    %35 = vector.shape_cast %34 : vector<128xf32> to vector<1x128xf32>
    %36 = arith.mulf %33, %28 : vector<176x128xf32>
    %cst_21 = arith.constant dense<0.000000e+00> : vector<128xf32>
    %37 = vector.multi_reduction <add>, %36, %cst_21 [0] : vector<176x128xf32> to vector<128xf32>
    %38 = vector.shape_cast %37 : vector<128xf32> to vector<1x128xf32>
    %39 = tpu.iota {dimensions = array<i32: 0>} : vector<8x128xi32>
    %c0_i32 = arith.constant 0 : i32
    %40 = vector.broadcast %c0_i32 : i32 to vector<8x128xi32>
    %41 = arith.cmpi eq, %39, %40 : vector<8x128xi32>
    %c1_i32 = arith.constant 1 : i32
    %42 = vector.broadcast %c1_i32 : i32 to vector<8x128xi32>
    %43 = arith.cmpi eq, %39, %42 : vector<8x128xi32>
    %cst_22 = arith.constant 0.000000e+00 : f32
    %44 = vector.shape_cast %38 : vector<1x128xf32> to vector<1x128xf32>
    %45 = vector.broadcast %44 : vector<1x128xf32> to vector<8x128xf32>
    %46 = vector.broadcast %cst_22 : f32 to vector<8x128xf32>
    %47 = arith.select %43, %45, %46 : vector<8x128xi1>, vector<8x128xf32>
    %48 = vector.shape_cast %35 : vector<1x128xf32> to vector<1x128xf32>
    %49 = vector.broadcast %48 : vector<1x128xf32> to vector<8x128xf32>
    %50 = arith.select %41, %49, %47 : vector<8x128xi1>, vector<8x128xf32>
    %c0_23 = arith.constant 0 : index
    %c0_24 = arith.constant 0 : index
    %51 = vector.load %arg6[%c0_23, %c0_24] : memref<8x128xf32, #tpu.memory_space<vmem>>, vector<8x128xf32>
    tpu.vector_store %arg6[%c0_23, %c0_24], %50 {strides = array<i32>} : memref<8x128xf32, #tpu.memory_space<vmem>>, vector<8x128xf32>,
    return
  }
  func.func @transform_0(%arg0: i32) -> (i32, i32) {
    %c0_i32 = arith.constant 0 : i32
    %c0_i32_0 = arith.constant 0 : i32
    return %arg0, %c0_i32 : i32, i32
  }
  func.func @transform_1(%arg0: i32) -> (i32, i32) {
    %c1_i32 = arith.constant 1 : i32
    %0 = arith.addi %arg0, %c1_i32 : i32
    %c11_i32 = arith.constant 11 : i32
    %1 = arith.muli %0, %c11_i32 : i32
    %c0_i32 = arith.constant 0 : i32
    %c0_i32_0 = arith.constant 0 : i32
    return %1, %c0_i32 : i32, i32
  }
  func.func @transform_2(%arg0: i32) -> (i32, i32, i32) {
    %c0_i32 = arith.constant 0 : i32
    %c0_i32_0 = arith.constant 0 : i32
    %c0_i32_1 = arith.constant 0 : i32
    %c0_i32_2 = arith.constant 0 : i32
    return %c0_i32, %c0_i32_0, %c0_i32_1 : i32, i32, i32
  }
  func.func @transform_3(%arg0: i32) -> (i32, i32) {
    %c0_i32 = arith.constant 0 : i32
    %c0_i32_0 = arith.constant 0 : i32
    return %arg0, %c0_i32 : i32, i32
  }
  func.func @transform_4(%arg0: i32) -> (i32, i32) {
    %c0_i32 = arith.constant 0 : i32
    %c0_i32_0 = arith.constant 0 : i32
    return %arg0, %c0_i32 : i32, i32
  }
  func.func @transform_5(%arg0: i32) -> (i32, i32) {
    %c0_i32 = arith.constant 0 : i32
    %c0_i32_0 = arith.constant 0 : i32
    return %arg0, %c0_i32 : i32, i32
  }
}

</mosaic_0001>

<llo_original>
// kernel: tpu_custom_call.1
$region0: #{tpu_custom_call.1}
  #allocation0 [shape = 'u32[]', space=smem, size = 0x4, offset = 0x4, fixed_abs, tag = 'smem constant byte address 0x4 - core index']
  #allocation1 [shape = 'u32[144,128]{1,0:T(1,128)}', space=vmem, size = 0x12000, scoped, tag = 'internal scratch']
  %s0 = inlined_call_operand.vmem [shape: bf16[192,16], index: 0, kind: input, shape index: {}]
  %s1 = inlined_call_operand.vmem [shape: bf16[192,16], index: 1, kind: input, shape index: {}]
  %s2 = inlined_call_operand.vmem [shape: bf16[4,16,128], index: 2, kind: input, shape index: {}]
  %s3 = inlined_call_operand.vmem [shape: f32[176,1], index: 3, kind: input, shape index: {}]
  %s4 = inlined_call_operand.hbm [shape: bf16[176,128], index: 4, kind: output, shape index: {0}]
  %s5 = inlined_call_operand.hbm [shape: f32[8,128], index: 5, kind: output, shape index: {1}]
  %6 = xla_tuple %s4, %s5
  %s7 = sld [smem:[#allocation0]]
  $region34: #{tpu_custom_call.1} parent=0
    _
  %s9 = ssub.s32 1, %s7
  %s10 = scalar_select 0, %s9, %s7
  $region1: #{tpu_custom_call.1} parent=0
    #allocation2 [shape = 'u8[45056]{0}', space=vmem, size = 0xb000, scoped, tag = 'output window, operand 0, single buffered']
    #allocation3 [shape = 's32[1]{0}', space=sflag, size = 0x4, scoped, tag = 'scoped memory for tpu_custom_call.1']
    #allocation4 [shape = 'u8[4096]{0}', space=vmem, size = 0x1000, scoped, tag = 'output window, operand 1, single buffered']
    #allocation5 [shape = 's32[1]{0}', space=sflag, size = 0x4, scoped, tag = 'scoped memory for tpu_custom_call.1']
    %11 = vsyncpa [#allocation3], 0
    %12 = vsyncpa [#allocation5], 0
    // Predicated region
    $region2: #{tpu_custom_call.1} parent=1 // pred_check
      _
    $region3: #{tpu_custom_call.1} parent=1 // pred_check_branch
      %14 = sbr.rel (0) target = $region5
    $region4: #{tpu_custom_call.1} parent=1 // pred_region
      _
    $region5: #{tpu_custom_call.1} parent=1 // pred_fallthru
      _
    // Predicated region
    $region6: #{tpu_custom_call.1} parent=1 // pred_check
      _
    $region7: #{tpu_custom_call.1} parent=1 // pred_check_branch
      %16 = sbr.rel (0) target = $region9
    $region8: #{tpu_custom_call.1} parent=1 // pred_region
      %s17 = sadd.s32 0, 1
      %s18 = smul.u32 %s17, 11
      %s19 = smul.u32 2, %s18
      %p20 = scmp.lt.s32.totalorder %s19, 23
      %s21 = scalar_select %p20, %s19, 23
      %s22 = smul.addr %s21, 4
      %s23 = scalar_lea.vmem %s1, %s22
      %s24 = sadd.s32 0, 1
      %s25 = smul.u32 %s24, 11
      %s26 = smul.u32 2, %s25
    $region9: #{tpu_custom_call.1} parent=1 // pred_fallthru
      _
    // Predicated region
    $region10: #{tpu_custom_call.1} parent=1 // pred_check
      _
    $region11: #{tpu_custom_call.1} parent=1 // pred_check_branch
      %28 = sbr.rel (0) target = $region13
    $region12: #{tpu_custom_call.1} parent=1 // pred_region
      _
    $region13: #{tpu_custom_call.1} parent=1 // pred_fallthru
      _
    // Predicated region
    $region14: #{tpu_custom_call.1} parent=1 // pred_check
      _
    $region15: #{tpu_custom_call.1} parent=1 // pred_check_branch
      %30 = sbr.rel (0) target = $region17
    $region16: #{tpu_custom_call.1} parent=1 // pred_region
      _
    $region17: #{tpu_custom_call.1} parent=1 // pred_fallthru
      _
    %s31 = sadd.s32 0, 1
    %s32 = smul.u32 %s31, 11
    %s33 = smul.u32 2, %s32
    %p34 = scmp.lt.s32.totalorder %s33, 23
    %s35 = scalar_select %p34, %s33, 23
    %s36 = smul.addr %s35, 4
    %s37 = scalar_lea.vmem %s1, %s36
    %s38 = sadd.s32 0, 1
    %s39 = smul.u32 %s38, 11
    %s40 = smul.u32 2, %s39
    %p41 = scmp.lt.s32.totalorder %s40, 23
    %s42 = scalar_select %p41, %s40, 23
    %s43 = smul.addr %s42, 4
    %s44 = scalar_lea.vmem %s1, %s43
    %s45 = sadd.s32 0, 1
    %s46 = smul.u32 %s45, 11
    %s47 = smul.u32 2, %s46
    %v49 = vld [vmem:[%s0] sm:$0xf]
    %v50 = vld [vmem:[%s0 + $0x4] sm:$0xf]
    %v51 = vld [vmem:[%s0 + $0x8] sm:$0xf]
    %v52 = vld [vmem:[%s0 + $0xc] sm:$0xf]
    %v53 = vld [vmem:[%s0 + $0x10] sm:$0xf]
    %v54 = vld [vmem:[%s0 + $0x14] sm:$0xf]
    %v55 = vld [vmem:[%s0 + $0x18] sm:$0xf]
    %v56 = vld [vmem:[%s0 + $0x1c] sm:$0xf]
    %v57 = vld [vmem:[%s0 + $0x20] sm:$0xf]
    %v58 = vld [vmem:[%s0 + $0x24] sm:$0xf]
    %v59 = vld [vmem:[%s0 + $0x28] sm:$0xf]
    %v60 = vld [vmem:[%s0 + $0x2c] sm:$0xf]
    %v61 = vld [vmem:[%s0 + $0x30] sm:$0xf]
    %v62 = vld [vmem:[%s0 + $0x34] sm:$0xf]
    %v63 = vld [vmem:[%s0 + $0x38] sm:$0xf]
    %v64 = vld [vmem:[%s0 + $0x3c] sm:$0xf]
    %v65 = vld [vmem:[%s0 + $0x40] sm:$0xf]
    %v66 = vld [vmem:[%s0 + $0x44] sm:$0xf]
    %v67 = vld [vmem:[%s0 + $0x48] sm:$0xf]
    %v68 = vld [vmem:[%s0 + $0x4c] sm:$0xf]
    %v69 = vld [vmem:[%s0 + $0x50] sm:$0xf]
    %v70 = vld [vmem:[%s0 + $0x54] sm:$0xf]
    %v71 = vld [vmem:[%s44] sm:$0xf]
    %v72 = vld [vmem:[%s44 + $0x4] sm:$0xf]
    %v95 = vunpack.c.l.b16 %v49
    %v96 = vunpack.c.l.b16 %v50
    %v97 = vunpack.c.l.b16 %v51
    %v98 = vunpack.c.l.b16 %v52
    %v99 = vunpack.c.l.b16 %v53
    %v100 = vunpack.c.l.b16 %v54
    %v101 = vunpack.c.l.b16 %v55
    %v102 = vunpack.c.l.b16 %v56
    %v103 = vunpack.c.l.b16 %v57
    %v104 = vunpack.c.l.b16 %v58
    %v105 = vunpack.c.l.b16 %v59
    %v106 = vunpack.c.l.b16 %v60
    %v107 = vunpack.c.l.b16 %v61
    %v108 = vunpack.c.l.b16 %v62
    %v109 = vunpack.c.l.b16 %v63
    %v110 = vunpack.c.l.b16 %v64
    %v111 = vunpack.c.l.b16 %v65
    %v112 = vunpack.c.l.b16 %v66
    %v113 = vunpack.c.l.b16 %v67
    %v114 = vunpack.c.l.b16 %v68
    %v115 = vunpack.c.l.b16 %v69
    %v116 = vunpack.c.l.b16 %v70
    %v117 = vpack.c.b16 %v96, %v95
    %v118 = vpack.c.b16 %v98, %v97
    %v119 = vpack.c.b16 %v100, %v99
    %v120 = vpack.c.b16 %v102, %v101
    %v121 = vpack.c.b16 %v104, %v103
    %v122 = vpack.c.b16 %v106, %v105
    %v123 = vpack.c.b16 %v108, %v107
    %v124 = vpack.c.b16 %v110, %v109
    %v125 = vpack.c.b16 %v112, %v111
    %v126 = vpack.c.b16 %v114, %v113
    %v127 = vpack.c.b16 %v116, %v115
    %v141 = vunpack.c.l.b16 %v71
    %v142 = vunpack.c.l.b16 %v72
    %v143 = vpack.c.b16 %v142, %v141
    %v145 = vunpack.c.l.bf16 %v117
    %v146 = vunpack.c.h.bf16 %v117
    %v147 = vunpack.c.l.bf16 %v118
    %v148 = vunpack.c.h.bf16 %v118
    %v149 = vunpack.c.l.bf16 %v119
    %v150 = vunpack.c.h.bf16 %v119
    %v151 = vunpack.c.l.bf16 %v120
    %v152 = vunpack.c.h.bf16 %v120
    %v153 = vunpack.c.l.bf16 %v121
    %v154 = vunpack.c.h.bf16 %v121
    %v155 = vunpack.c.l.bf16 %v122
    %v156 = vunpack.c.h.bf16 %v122
    %v157 = vunpack.c.l.bf16 %v123
    %v158 = vunpack.c.h.bf16 %v123
    %v159 = vunpack.c.l.bf16 %v124
    %v160 = vunpack.c.h.bf16 %v124
    %v161 = vunpack.c.l.bf16 %v125
    %v162 = vunpack.c.h.bf16 %v125
    %v163 = vunpack.c.l.bf16 %v126
    %v164 = vunpack.c.h.bf16 %v126
    %v165 = vunpack.c.l.bf16 %v127
    %v166 = vunpack.c.h.bf16 %v127
    %v167 = vunpack.c.l.bf16 %v143
    %v168 = vunpack.c.h.bf16 %v143
    %v169 = vpack.c.bf16 %v146, %v145
    %v170 = vpack.c.bf16 %v148, %v147
    %v171 = vpack.c.bf16 %v150, %v149
    %v172 = vpack.c.bf16 %v152, %v151
    %v173 = vpack.c.bf16 %v154, %v153
    %v174 = vpack.c.bf16 %v156, %v155
    %v175 = vpack.c.bf16 %v158, %v157
    %v176 = vpack.c.bf16 %v160, %v159
    %v177 = vpack.c.bf16 %v162, %v161
    %v178 = vpack.c.bf16 %v164, %v163
    %v179 = vpack.c.bf16 %v166, %v165
    %v180 = vld [vmem:[%s2] sm:$0xf]
    %v181 = vld [vmem:[%s2 + $0x4] sm:$0xf]
    %v182 = vpack.c.bf16 %v167, %v167
    %s183 = scalar_lea.vmem %s2, 8
    %v184 = vld [vmem:[%s183] sm:$0xf]
    %v185 = vld [vmem:[%s183 + $0x4] sm:$0xf]
    %vm186 = vsmask.f32 7424
    %v188 = vshrl.u32 %v169, 16
    %v190 = vshll.u32 %v169, 16
    %v192 = vrot.slane %v190, 1
    %v193 = vor.u32 %v188, %v192
    %v195 = vshll.u32 %v170, 16
    %v197 = vrot.slane %v195, 1
    %v198 = vsel %vm186, %v193, %v197
    %v199 = vshrl.u32 %v170, 16
    %v201 = vor.u32 %v199, %v197
    %v203 = vshll.u32 %v171, 16
    %v205 = vrot.slane %v203, 1
    %v206 = vsel %vm186, %v201, %v205
    %v207 = vshrl.u32 %v171, 16
    %v209 = vor.u32 %v207, %v205
    %v211 = vshll.u32 %v172, 16
    %v213 = vrot.slane %v211, 1
    %v214 = vsel %vm186, %v209, %v213
    %v215 = vshrl.u32 %v172, 16
    %v217 = vor.u32 %v215, %v213
    %v219 = vshll.u32 %v173, 16
    %v221 = vrot.slane %v219, 1
    %v222 = vsel %vm186, %v217, %v221
    %v223 = vshrl.u32 %v173, 16
    %v225 = vor.u32 %v223, %v221
    %v227 = vshll.u32 %v174, 16
    %v229 = vrot.slane %v227, 1
    %v230 = vsel %vm186, %v225, %v229
    %v231 = vshrl.u32 %v174, 16
    %v233 = vor.u32 %v231, %v229
    %v235 = vshll.u32 %v175, 16
    %v237 = vrot.slane %v235, 1
    %v238 = vsel %vm186, %v233, %v237
    %v239 = vshrl.u32 %v175, 16
    %v241 = vor.u32 %v239, %v237
    %v243 = vshll.u32 %v176, 16
    %v245 = vrot.slane %v243, 1
    %v246 = vsel %vm186, %v241, %v245
    %v247 = vshrl.u32 %v176, 16
    %v249 = vor.u32 %v247, %v245
    %v251 = vshll.u32 %v177, 16
    %v253 = vrot.slane %v251, 1
    %v254 = vsel %vm186, %v249, %v253
    %v255 = vshrl.u32 %v177, 16
    %v257 = vor.u32 %v255, %v253
    %v259 = vshll.u32 %v178, 16
    %v261 = vrot.slane %v259, 1
    %v262 = vsel %vm186, %v257, %v261
    %v263 = vshrl.u32 %v178, 16
    %v265 = vor.u32 %v263, %v261
    %v267 = vshll.u32 %v179, 16
    %v269 = vrot.slane %v267, 1
    %v270 = vsel %vm186, %v265, %v269
    %v271 = vshrl.u32 %v179, 16
    %v273 = vor.u32 %v271, %v269
    %v275 = vshll.u32 %v182, 16
    %v277 = vrot.slane %v275, 1
    %v278 = vsel %vm186, %v273, %v277
    %v281 = vunpack.c.l.b16 %v184
    %v282 = vunpack.c.l.b16 %v185
    %v283 = vpack.c.b16 %v282, %v281
    %vm285 = vcmask 130048
    %v287 = vsel %vm285, %v198, 0
    %v290 = vsel %vm285, %v206, 0
    %v293 = vsel %vm285, %v214, 0
    %v296 = vsel %vm285, %v222, 0
    %v299 = vsel %vm285, %v230, 0
    %v302 = vsel %vm285, %v238, 0
    %v305 = vsel %vm285, %v246, 0
    %v308 = vsel %vm285, %v254, 0
    %v311 = vsel %vm285, %v262, 0
    %v314 = vsel %vm285, %v270, 0
    %v317 = vsel %vm285, %v278, 0
    %319 = vmatprep.subr.bf16.mxu0 0
    %320 = vmatpush1.bf16.msra.mxu0 %v283
    %321 = vmatprep.subr.bf16.mxu0 0
    %322 = vmatpush1.bf16.msra.mxu0 0
    %323 = vmatprep.subr.bf16.mxu0 0
    %324 = vmatpush1.bf16.msra.mxu0 0
    %325 = vmatprep.subr.bf16.mxu0 0
    %326 = vmatpush1.bf16.msra.mxu0 0
    %327 = vmatprep.subr.bf16.mxu0 0
    %328 = vmatpush1.bf16.msra.mxu0 0
    %329 = vmatprep.subr.bf16.mxu0 0
    %330 = vmatpush1.bf16.msra.mxu0 0
    %331 = vmatprep.subr.bf16.mxu0 0
    %332 = vmatpush1.bf16.msra.mxu0 0
    %333 = vmatprep.subr.bf16.mxu0 0
    %334 = vmatpush1.bf16.msra.mxu0 0
    %335 = vmatprep.subr.bf16.mxu0 0
    %336 = vmatpush1.bf16.msra.mxu0 0
    %337 = vmatprep.subr.bf16.mxu0 0
    %338 = vmatpush1.bf16.msra.mxu0 0
    %339 = vmatprep.subr.bf16.mxu0 0
    %340 = vmatpush1.bf16.msra.mxu0 0
    %341 = vmatprep.subr.bf16.mxu0 0
    %342 = vmatpush1.bf16.msra.mxu0 0
    %343 = vmatprep.subr.bf16.mxu0 0
    %344 = vmatpush1.bf16.msra.mxu0 0
    %345 = vmatprep.subr.bf16.mxu0 0
    %346 = vmatpush1.bf16.msra.mxu0 0
    %347 = vmatprep.subr.bf16.mxu0 0
    %348 = vmatpush1.bf16.msra.mxu0 0
    %349 = vmatprep.subr.bf16.mxu0 0
    %350 = vmatpush1.bf16.msra.mxu0 0
    %351 = vmatprep.mubr.bf16.mxu0 0
    %352 = vmatmul.mubr.bf16.gmra.mrb[0].mxu0 %v287
    %v353 = vpop.f32.mrb[0].mxu0
    %v354 = vadd.f32 0.0, %v353
    %v355 = vpop.f32.mrb[0].mxu0
    %v356 = vpop.f32.mrb[0].mxu0
    %v357 = vadd.f32 0.0, %v356
    %v358 = vpop.f32.mrb[0].mxu0
    %359 = vmatprep.mubr.bf16.mxu0 0
    %360 = vmatmul.mubr.bf16.gmra.mrb[0].mxu0 %v290
    %v361 = vpop.f32.mrb[0].mxu0
    %v362 = vadd.f32 0.0, %v361
    %v363 = vpop.f32.mrb[0].mxu0
    %v364 = vpop.f32.mrb[0].mxu0
    %v365 = vadd.f32 0.0, %v364
    %v366 = vpop.f32.mrb[0].mxu0
    %367 = vmatprep.mubr.bf16.mxu0 0
    %368 = vmatmul.mubr.bf16.gmra.mrb[0].mxu0 %v293
    %v369 = vpop.f32.mrb[0].mxu0
    %v370 = vadd.f32 0.0, %v369
    %v371 = vpop.f32.mrb[0].mxu0
    %v372 = vpop.f32.mrb[0].mxu0
    %v373 = vadd.f32 0.0, %v372
    %v374 = vpop.f32.mrb[0].mxu0
    %375 = vmatprep.mubr.bf16.mxu0 0
    %376 = vmatmul.mubr.bf16.gmra.mrb[0].mxu0 %v296
    %v377 = vpop.f32.mrb[0].mxu0
    %v378 = vadd.f32 0.0, %v377
    %v379 = vpop.f32.mrb[0].mxu0
    %v380 = vpop.f32.mrb[0].mxu0
    %v381 = vadd.f32 0.0, %v380
    %v382 = vpop.f32.mrb[0].mxu0
    %383 = vmatprep.mubr.bf16.mxu0 0
    %384 = vmatmul.mubr.bf16.gmra.mrb[0].mxu0 %v299
    %v385 = vpop.f32.mrb[0].mxu0
    %v386 = vadd.f32 0.0, %v385
    %v387 = vpop.f32.mrb[0].mxu0
    %v388 = vpop.f32.mrb[0].mxu0
    %v389 = vadd.f32 0.0, %v388
    %v390 = vpop.f32.mrb[0].mxu0
    %391 = vmatprep.mubr.bf16.mxu0 0
    %392 = vmatmul.mubr.bf16.gmra.mrb[0].mxu0 %v302
    %v393 = vpop.f32.mrb[0].mxu0
    %v394 = vadd.f32 0.0, %v393
    %v395 = vpop.f32.mrb[0].mxu0
    %v396 = vpop.f32.mrb[0].mxu0
    %v397 = vadd.f32 0.0, %v396
    %v398 = vpop.f32.mrb[0].mxu0
    %399 = vmatprep.mubr.bf16.mxu0 0
    %400 = vmatmul.mubr.bf16.gmra.mrb[0].mxu0 %v305
    %v401 = vpop.f32.mrb[0].mxu0
    %v402 = vadd.f32 0.0, %v401
    %v403 = vpop.f32.mrb[0].mxu0
    %v404 = vpop.f32.mrb[0].mxu0
    %v405 = vadd.f32 0.0, %v404
    %v406 = vpop.f32.mrb[0].mxu0
    %407 = vmatprep.mubr.bf16.mxu0 0
    %408 = vmatmul.mubr.bf16.gmra.mrb[0].mxu0 %v308
    %v409 = vpop.f32.mrb[0].mxu0
    %v410 = vadd.f32 0.0, %v409
    %v411 = vpop.f32.mrb[0].mxu0
    %v412 = vpop.f32.mrb[0].mxu0
    %v413 = vadd.f32 0.0, %v412
    %v414 = vpop.f32.mrb[0].mxu0
    %415 = vmatprep.mubr.bf16.mxu0 0
    %416 = vmatmul.mubr.bf16.gmra.mrb[0].mxu0 %v311
    %v417 = vpop.f32.mrb[0].mxu0
    %v418 = vadd.f32 0.0, %v417
    %v419 = vpop.f32.mrb[0].mxu0
    %v420 = vpop.f32.mrb[0].mxu0
    %v421 = vadd.f32 0.0, %v420
    %v422 = vpop.f32.mrb[0].mxu0
    %423 = vmatprep.mubr.bf16.mxu0 0
    %424 = vmatmul.mubr.bf16.gmra.mrb[0].mxu0 %v314
    %v425 = vpop.f32.mrb[0].mxu0
    %v426 = vadd.f32 0.0, %v425
    %v427 = vpop.f32.mrb[0].mxu0
    %v428 = vpop.f32.mrb[0].mxu0
    %v429 = vadd.f32 0.0, %v428
    %v430 = vpop.f32.mrb[0].mxu0
    %431 = vmatprep.mubr.bf16.mxu0 0
    %432 = vmatmul.mubr.bf16.gmra.mrb[0].mxu0 %v317
    %v433 = vpop.f32.mrb[0].mxu0
    %v434 = vadd.f32 0.0, %v433
    %v435 = vpop.f32.mrb[0].mxu0
    %v436 = vpop.f32.mrb[0].mxu0
    %v437 = vadd.f32 0.0, %v436
    %v438 = vpop.f32.mrb[0].mxu0
    %439 = vdwg.mxu0
    %v442 = vunpack.c.l.b16 %v180
    %v443 = vunpack.c.l.b16 %v181
    %v444 = vpack.c.b16 %v443, %v442
    %v446 = vsel %vm285, %v169, 0
    %v448 = vsel %vm285, %v170, 0
    %v450 = vsel %vm285, %v171, 0
    %v452 = vsel %vm285, %v172, 0
    %v454 = vsel %vm285, %v173, 0
    %v456 = vsel %vm285, %v174, 0
    %v458 = vsel %vm285, %v175, 0
    %v460 = vsel %vm285, %v176, 0
    %v462 = vsel %vm285, %v177, 0
    %v464 = vsel %vm285, %v178, 0
    %v466 = vsel %vm285, %v179, 0
    %468 = vmatprep.subr.bf16.mxu0 0
    %469 = vmatpush1.bf16.msra.mxu0 %v444
    %470 = vmatprep.subr.bf16.mxu0 0
    %471 = vmatpush1.bf16.msra.mxu0 0
    %472 = vmatprep.subr.bf16.mxu0 0
    %473 = vmatpush1.bf16.msra.mxu0 0
    %474 = vmatprep.subr.bf16.mxu0 0
    %475 = vmatpush1.bf16.msra.mxu0 0
    %476 = vmatprep.subr.bf16.mxu0 0
    %477 = vmatpush1.bf16.msra.mxu0 0
    %478 = vmatprep.subr.bf16.mxu0 0
    %479 = vmatpush1.bf16.msra.mxu0 0
    %480 = vmatprep.subr.bf16.mxu0 0
    %481 = vmatpush1.bf16.msra.mxu0 0
    %482 = vmatprep.subr.bf16.mxu0 0
    %483 = vmatpush1.bf16.msra.mxu0 0
    %484 = vmatprep.subr.bf16.mxu0 0
    %485 = vmatpush1.bf16.msra.mxu0 0
    %486 = vmatprep.subr.bf16.mxu0 0
    %487 = vmatpush1.bf16.msra.mxu0 0
    %488 = vmatprep.subr.bf16.mxu0 0
    %489 = vmatpush1.bf16.msra.mxu0 0
    %490 = vmatprep.subr.bf16.mxu0 0
    %491 = vmatpush1.bf16.msra.mxu0 0
    %492 = vmatprep.subr.bf16.mxu0 0
    %493 = vmatpush1.bf16.msra.mxu0 0
    %494 = vmatprep.subr.bf16.mxu0 0
    %495 = vmatpush1.bf16.msra.mxu0 0
    %496 = vmatprep.subr.bf16.mxu0 0
    %497 = vmatpush1.bf16.msra.mxu0 0
    %498 = vmatprep.subr.bf16.mxu0 0
    %499 = vmatpush1.bf16.msra.mxu0 0
    %500 = vmatprep.mubr.bf16.mxu0 0
    %501 = vmatmul.mubr.bf16.gmra.mrb[0].mxu0 %v446
    %v502 = vpop.f32.mrb[0].mxu0
    %v503 = vadd.f32 %v354, %v502
    %v504 = vpop.f32.mrb[0].mxu0
    %v505 = vpop.f32.mrb[0].mxu0
    %v506 = vadd.f32 %v357, %v505
    %v507 = vpop.f32.mrb[0].mxu0
    %508 = vmatprep.mubr.bf16.mxu0 0
    %509 = vmatmul.mubr.bf16.gmra.mrb[0].mxu0 %v448
    %v510 = vpop.f32.mrb[0].mxu0
    %v511 = vadd.f32 %v362, %v510
    %v512 = vpop.f32.mrb[0].mxu0
    %v513 = vpop.f32.mrb[0].mxu0
    %v514 = vadd.f32 %v365, %v513
    %v515 = vpop.f32.mrb[0].mxu0
    %516 = vmatprep.mubr.bf16.mxu0 0
    %517 = vmatmul.mubr.bf16.gmra.mrb[0].mxu0 %v450
    %v518 = vpop.f32.mrb[0].mxu0
    %v519 = vadd.f32 %v370, %v518
    %v520 = vpop.f32.mrb[0].mxu0
    %v521 = vpop.f32.mrb[0].mxu0
    %v522 = vadd.f32 %v373, %v521
    %v523 = vpop.f32.mrb[0].mxu0
    %524 = vmatprep.mubr.bf16.mxu0 0
    %525 = vmatmul.mubr.bf16.gmra.mrb[0].mxu0 %v452
    %v526 = vpop.f32.mrb[0].mxu0
    %v527 = vadd.f32 %v378, %v526
    %v528 = vpop.f32.mrb[0].mxu0
    %v529 = vpop.f32.mrb[0].mxu0
    %v530 = vadd.f32 %v381, %v529
    %v531 = vpop.f32.mrb[0].mxu0
    %532 = vmatprep.mubr.bf16.mxu0 0
    %533 = vmatmul.mubr.bf16.gmra.mrb[0].mxu0 %v454
    %v534 = vpop.f32.mrb[0].mxu0
    %v535 = vadd.f32 %v386, %v534
    %v536 = vpop.f32.mrb[0].mxu0
    %v537 = vpop.f32.mrb[0].mxu0
    %v538 = vadd.f32 %v389, %v537
    %v539 = vpop.f32.mrb[0].mxu0
    %540 = vmatprep.mubr.bf16.mxu0 0
    %541 = vmatmul.mubr.bf16.gmra.mrb[0].mxu0 %v456
    %v542 = vpop.f32.mrb[0].mxu0
    %v543 = vadd.f32 %v394, %v542
    %v544 = vpop.f32.mrb[0].mxu0
    %v545 = vpop.f32.mrb[0].mxu0
    %v546 = vadd.f32 %v397, %v545
    %v547 = vpop.f32.mrb[0].mxu0
    %548 = vmatprep.mubr.bf16.mxu0 0
    %549 = vmatmul.mubr.bf16.gmra.mrb[0].mxu0 %v458
    %v550 = vpop.f32.mrb[0].mxu0
    %v551 = vadd.f32 %v402, %v550
    %v552 = vpop.f32.mrb[0].mxu0
    %v553 = vpop.f32.mrb[0].mxu0
    %v554 = vadd.f32 %v405, %v553
    %v555 = vpop.f32.mrb[0].mxu0
    %556 = vmatprep.mubr.bf16.mxu0 0
    %557 = vmatmul.mubr.bf16.gmra.mrb[0].mxu0 %v460
    %v558 = vpop.f32.mrb[0].mxu0
    %v559 = vadd.f32 %v410, %v558
    %v560 = vpop.f32.mrb[0].mxu0
    %v561 = vpop.f32.mrb[0].mxu0
    %v562 = vadd.f32 %v413, %v561
    %v563 = vpop.f32.mrb[0].mxu0
    %564 = vmatprep.mubr.bf16.mxu0 0
    %565 = vmatmul.mubr.bf16.gmra.mrb[0].mxu0 %v462
    %v566 = vpop.f32.mrb[0].mxu0
    %v567 = vadd.f32 %v418, %v566
    %v568 = vpop.f32.mrb[0].mxu0
    %v569 = vpop.f32.mrb[0].mxu0
    %v570 = vadd.f32 %v421, %v569
    %v571 = vpop.f32.mrb[0].mxu0
    %572 = vmatprep.mubr.bf16.mxu0 0
    %573 = vmatmul.mubr.bf16.gmra.mrb[0].mxu0 %v464
    %v574 = vpop.f32.mrb[0].mxu0
    %v575 = vadd.f32 %v426, %v574
    %v576 = vpop.f32.mrb[0].mxu0
    %v577 = vpop.f32.mrb[0].mxu0
    %v578 = vadd.f32 %v429, %v577
    %v579 = vpop.f32.mrb[0].mxu0
    %580 = vmatprep.mubr.bf16.mxu0 0
    %581 = vmatmul.mubr.bf16.gmra.mrb[0].mxu0 %v466
    %v582 = vpop.f32.mrb[0].mxu0
    %v583 = vadd.f32 %v434, %v582
    %v584 = vpop.f32.mrb[0].mxu0
    %v585 = vpop.f32.mrb[0].mxu0
    %v586 = vadd.f32 %v437, %v585
    %v587 = vpop.f32.mrb[0].mxu0
    %588 = vdwg.mxu0
    %v589 = vpack.c.bf16 %v147, %v146
    %v590 = vpack.c.bf16 %v149, %v148
    %v591 = vpack.c.bf16 %v151, %v150
    %v592 = vpack.c.bf16 %v153, %v152
    %v593 = vpack.c.bf16 %v155, %v154
    %v594 = vpack.c.bf16 %v157, %v156
    %v595 = vpack.c.bf16 %v159, %v158
    %v596 = vpack.c.bf16 %v161, %v160
    %v597 = vpack.c.bf16 %v163, %v162
    %v598 = vpack.c.bf16 %v165, %v164
    %v599 = vpack.c.bf16 %v167, %v166
    %v600 = vpack.c.bf16 %v168, %v168
    %s601 = scalar_lea.vmem %s2, 16
    %v602 = vld [vmem:[%s601] sm:$0xf]
    %v603 = vld [vmem:[%s601 + $0x4] sm:$0xf]
    %v605 = vshrl.u32 %v589, 16
    %v607 = vshll.u32 %v589, 16
    %v609 = vrot.slane %v607, 1
    %v610 = vor.u32 %v605, %v609
    %v612 = vshll.u32 %v590, 16
    %v614 = vrot.slane %v612, 1
    %v615 = vsel %vm186, %v610, %v614
    %v616 = vshrl.u32 %v590, 16
    %v618 = vor.u32 %v616, %v614
    %v620 = vshll.u32 %v591, 16
    %v622 = vrot.slane %v620, 1
    %v623 = vsel %vm186, %v618, %v622
    %v624 = vshrl.u32 %v591, 16
    %v626 = vor.u32 %v624, %v622
    %v628 = vshll.u32 %v592, 16
    %v630 = vrot.slane %v628, 1
    %v631 = vsel %vm186, %v626, %v630
    %v632 = vshrl.u32 %v592, 16
    %v634 = vor.u32 %v632, %v630
    %v636 = vshll.u32 %v593, 16
    %v638 = vrot.slane %v636, 1
    %v639 = vsel %vm186, %v634, %v638
    %v640 = vshrl.u32 %v593, 16
    %v642 = vor.u32 %v640, %v638
    %v644 = vshll.u32 %v594, 16
    %v646 = vrot.slane %v644, 1
    %v647 = vsel %vm186, %v642, %v646
    %v648 = vshrl.u32 %v594, 16
    %v650 = vor.u32 %v648, %v646
    %v652 = vshll.u32 %v595, 16
    %v654 = vrot.slane %v652, 1
    %v655 = vsel %vm186, %v650, %v654
    %v656 = vshrl.u32 %v595, 16
    %v658 = vor.u32 %v656, %v654
    %v660 = vshll.u32 %v596, 16
    %v662 = vrot.slane %v660, 1
    %v663 = vsel %vm186, %v658, %v662
    %v664 = vshrl.u32 %v596, 16
    %v666 = vor.u32 %v664, %v662
    %v668 = vshll.u32 %v597, 16
    %v670 = vrot.slane %v668, 1
    %v671 = vsel %vm186, %v666, %v670
    %v672 = vshrl.u32 %v597, 16
    %v674 = vor.u32 %v672, %v670
    %v676 = vshll.u32 %v598, 16
    %v678 = vrot.slane %v676, 1
    %v679 = vsel %vm186, %v674, %v678
    %v680 = vshrl.u32 %v598, 16
    %v682 = vor.u32 %v680, %v678
    %v684 = vshll.u32 %v599, 16
    %v686 = vrot.slane %v684, 1
    %v687 = vsel %vm186, %v682, %v686
    %v688 = vshrl.u32 %v599, 16
    %v690 = vor.u32 %v688, %v686
    %v692 = vshll.u32 %v600, 16
    %v694 = vrot.slane %v692, 1
    %v695 = vsel %vm186, %v690, %v694
    %v698 = vunpack.c.l.b16 %v602
    %v699 = vunpack.c.l.b16 %v603
    %v700 = vpack.c.b16 %v699, %v698
    %v703 = vsel %vm285, %v615, 0
    %v706 = vsel %vm285, %v623, 0
    %v709 = vsel %vm285, %v631, 0
    %v712 = vsel %vm285, %v639, 0
    %v715 = vsel %vm285, %v647, 0
    %v718 = vsel %vm285, %v655, 0
    %v721 = vsel %vm285, %v663, 0
    %v724 = vsel %vm285, %v671, 0
    %v727 = vsel %vm285, %v679, 0
    %v730 = vsel %vm285, %v687, 0
    %v733 = vsel %vm285, %v695, 0
    %735 = vmatprep.subr.bf16.mxu0 0
    %736 = vmatpush1.bf16.msra.mxu0 %v700
    %737 = vmatprep.subr.bf16.mxu0 0
    %738 = vmatpush1.bf16.msra.mxu0 0
    %739 = vmatprep.subr.bf16.mxu0 0
    %740 = vmatpush1.bf16.msra.mxu0 0
    %741 = vmatprep.subr.bf16.mxu0 0
    %742 = vmatpush1.bf16.msra.mxu0 0
    %743 = vmatprep.subr.bf16.mxu0 0
    %744 = vmatpush1.bf16.msra.mxu0 0
    %745 = vmatprep.subr.bf16.mxu0 0
    %746 = vmatpush1.bf16.msra.mxu0 0
    %747 = vmatprep.subr.bf16.mxu0 0
    %748 = vmatpush1.bf16.msra.mxu0 0
    %749 = vmatprep.subr.bf16.mxu0 0
    %750 = vmatpush1.bf16.msra.mxu0 0
    %751 = vmatprep.subr.bf16.mxu0 0
    %752 = vmatpush1.bf16.msra.mxu0 0
    %753 = vmatprep.subr.bf16.mxu0 0
    %754 = vmatpush1.bf16.msra.mxu0 0
    %755 = vmatprep.subr.bf16.mxu0 0
    %756 = vmatpush1.bf16.msra.mxu0 0
    %757 = vmatprep.subr.bf16.mxu0 0
    %758 = vmatpush1.bf16.msra.mxu0 0
    %759 = vmatprep.subr.bf16.mxu0 0
    %760 = vmatpush1.bf16.msra.mxu0 0
    %761 = vmatprep.subr.bf16.mxu0 0
    %762 = vmatpush1.bf16.msra.mxu0 0
    %763 = vmatprep.subr.bf16.mxu0 0
    %764 = vmatpush1.bf16.msra.mxu0 0
    %765 = vmatprep.subr.bf16.mxu0 0
    %766 = vmatpush1.bf16.msra.mxu0 0
    %767 = vmatprep.mubr.bf16.mxu0 0
    %768 = vmatmul.mubr.bf16.gmra.mrb[0].mxu0 %v703
    %v769 = vpop.f32.mrb[0].mxu0
    %v770 = vadd.f32 0.0, %v769
    %v771 = vpop.f32.mrb[0].mxu0
    %v772 = vpop.f32.mrb[0].mxu0
    %v773 = vadd.f32 0.0, %v772
    %v774 = vpop.f32.mrb[0].mxu0
    %775 = vmatprep.mubr.bf16.mxu0 0
    %776 = vmatmul.mubr.bf16.gmra.mrb[0].mxu0 %v706
    %v777 = vpop.f32.mrb[0].mxu0
    %v778 = vadd.f32 0.0, %v777
    %v779 = vpop.f32.mrb[0].mxu0
    %v780 = vpop.f32.mrb[0].mxu0
    %v781 = vadd.f32 0.0, %v780
    %v782 = vpop.f32.mrb[0].mxu0
    %783 = vmatprep.mubr.bf16.mxu0 0
    %784 = vmatmul.mubr.bf16.gmra.mrb[0].mxu0 %v709
    %v785 = vpop.f32.mrb[0].mxu0
    %v786 = vadd.f32 0.0, %v785
    %v787 = vpop.f32.mrb[0].mxu0
    %v788 = vpop.f32.mrb[0].mxu0
    %v789 = vadd.f32 0.0, %v788
    %v790 = vpop.f32.mrb[0].mxu0
    %791 = vmatprep.mubr.bf16.mxu0 0
    %792 = vmatmul.mubr.bf16.gmra.mrb[0].mxu0 %v712
    %v793 = vpop.f32.mrb[0].mxu0
    %v794 = vadd.f32 0.0, %v793
    %v795 = vpop.f32.mrb[0].mxu0
    %v796 = vpop.f32.mrb[0].mxu0
    %v797 = vadd.f32 0.0, %v796
    %v798 = vpop.f32.mrb[0].mxu0
    %799 = vmatprep.mubr.bf16.mxu0 0
    %800 = vmatmul.mubr.bf16.gmra.mrb[0].mxu0 %v715
    %v801 = vpop.f32.mrb[0].mxu0
    %v802 = vadd.f32 0.0, %v801
    %v803 = vpop.f32.mrb[0].mxu0
    %v804 = vpop.f32.mrb[0].mxu0
    %v805 = vadd.f32 0.0, %v804
    %v806 = vpop.f32.mrb[0].mxu0
    %807 = vmatprep.mubr.bf16.mxu0 0
    %808 = vmatmul.mubr.bf16.gmra.mrb[0].mxu0 %v718
    %v809 = vpop.f32.mrb[0].mxu0
    %v810 = vadd.f32 0.0, %v809
    %v811 = vpop.f32.mrb[0].mxu0
    %v812 = vpop.f32.mrb[0].mxu0
    %v813 = vadd.f32 0.0, %v812
    %v814 = vpop.f32.mrb[0].mxu0
    %815 = vmatprep.mubr.bf16.mxu0 0
    %816 = vmatmul.mubr.bf16.gmra.mrb[0].mxu0 %v721
    %v817 = vpop.f32.mrb[0].mxu0
    %v818 = vadd.f32 0.0, %v817
    %v819 = vpop.f32.mrb[0].mxu0
    %v820 = vpop.f32.mrb[0].mxu0
    %v821 = vadd.f32 0.0, %v820
    %v822 = vpop.f32.mrb[0].mxu0
    %823 = vmatprep.mubr.bf16.mxu0 0
    %824 = vmatmul.mubr.bf16.gmra.mrb[0].mxu0 %v724
    %v825 = vpop.f32.mrb[0].mxu0
    %v826 = vadd.f32 0.0, %v825
    %v827 = vpop.f32.mrb[0].mxu0
    %v828 = vpop.f32.mrb[0].mxu0
    %v829 = vadd.f32 0.0, %v828
    %v830 = vpop.f32.mrb[0].mxu0
    %831 = vmatprep.mubr.bf16.mxu0 0
    %832 = vmatmul.mubr.bf16.gmra.mrb[0].mxu0 %v727
    %v833 = vpop.f32.mrb[0].mxu0
    %v834 = vadd.f32 0.0, %v833
    %v835 = vpop.f32.mrb[0].mxu0
    %v836 = vpop.f32.mrb[0].mxu0
    %v837 = vadd.f32 0.0, %v836
    %v838 = vpop.f32.mrb[0].mxu0
    %839 = vmatprep.mubr.bf16.mxu0 0
    %840 = vmatmul.mubr.bf16.gmra.mrb[0].mxu0 %v730
    %v841 = vpop.f32.mrb[0].mxu0
    %v842 = vadd.f32 0.0, %v841
    %v843 = vpop.f32.mrb[0].mxu0
    %v844 = vpop.f32.mrb[0].mxu0
    %v845 = vadd.f32 0.0, %v844
    %v846 = vpop.f32.mrb[0].mxu0
    %847 = vmatprep.mubr.bf16.mxu0 0
    %848 = vmatmul.mubr.bf16.gmra.mrb[0].mxu0 %v733
    %v849 = vpop.f32.mrb[0].mxu0
    %v850 = vadd.f32 0.0, %v849
    %v851 = vpop.f32.mrb[0].mxu0
    %v852 = vpop.f32.mrb[0].mxu0
    %v853 = vadd.f32 0.0, %v852
    %v854 = vpop.f32.mrb[0].mxu0
    %855 = vdwg.mxu0
    %v856 = vadd.f32 %v503, %v770
    %v857 = vadd.f32 %v506, %v773
    %v858 = vadd.f32 %v511, %v778
    %v859 = vadd.f32 %v514, %v781
    %v860 = vadd.f32 %v519, %v786
    %v861 = vadd.f32 %v522, %v789
    %v862 = vadd.f32 %v527, %v794
    %v863 = vadd.f32 %v530, %v797
    %v864 = vadd.f32 %v535, %v802
    %v865 = vadd.f32 %v538, %v805
    %v866 = vadd.f32 %v543, %v810
    %v867 = vadd.f32 %v546, %v813
    %v868 = vadd.f32 %v551, %v818
    %v869 = vadd.f32 %v554, %v821
    %v870 = vadd.f32 %v559, %v826
    %v871 = vadd.f32 %v562, %v829
    %v872 = vadd.f32 %v567, %v834
    %v873 = vadd.f32 %v570, %v837
    %v874 = vadd.f32 %v575, %v842
    %v875 = vadd.f32 %v578, %v845
    %v876 = vadd.f32 %v583, %v850
    %v877 = vadd.f32 %v586, %v853
    %s878 = scalar_lea.vmem %s2, 24
    %v879 = vld [vmem:[%s878] sm:$0xf]
    %v880 = vld [vmem:[%s878 + $0x4] sm:$0xf]
    %vm893 = vcmask 1046528
    %v894 = vrot.slane %v589, 1
    %v895 = vrot.slane %v590, 1
    %v896 = vsel %vm893, %v894, %v895
    %v897 = vrot.slane %v591, 1
    %v898 = vsel %vm893, %v895, %v897
    %v899 = vrot.slane %v592, 1
    %v900 = vsel %vm893, %v897, %v899
    %v901 = vrot.slane %v593, 1
    %v902 = vsel %vm893, %v899, %v901
    %v903 = vrot.slane %v594, 1
    %v904 = vsel %vm893, %v901, %v903
    %v905 = vrot.slane %v595, 1
    %v906 = vsel %vm893, %v903, %v905
    %v907 = vrot.slane %v596, 1
    %v908 = vsel %vm893, %v905, %v907
    %v909 = vrot.slane %v597, 1
    %v910 = vsel %vm893, %v907, %v909
    %v911 = vrot.slane %v598, 1
    %v912 = vsel %vm893, %v909, %v911
    %v913 = vrot.slane %v599, 1
    %v914 = vsel %vm893, %v911, %v913
    %v915 = vrot.slane %v600, 1
    %v916 = vsel %vm893, %v913, %v915
    %v919 = vunpack.c.l.b16 %v879
    %v920 = vunpack.c.l.b16 %v880
    %v921 = vpack.c.b16 %v920, %v919
    %v924 = vsel %vm285, %v896, 0
    %v927 = vsel %vm285, %v898, 0
    %v930 = vsel %vm285, %v900, 0
    %v933 = vsel %vm285, %v902, 0
    %v936 = vsel %vm285, %v904, 0
    %v939 = vsel %vm285, %v906, 0
    %v942 = vsel %vm285, %v908, 0
    %v945 = vsel %vm285, %v910, 0
    %v948 = vsel %vm285, %v912, 0
    %v951 = vsel %vm285, %v914, 0
    %v954 = vsel %vm285, %v916, 0
    %956 = vmatprep.subr.bf16.mxu0 0
    %957 = vmatpush1.bf16.msra.mxu0 %v921
    %958 = vmatprep.subr.bf16.mxu0 0
    %959 = vmatpush1.bf16.msra.mxu0 0
    %960 = vmatprep.subr.bf16.mxu0 0
    %961 = vmatpush1.bf16.msra.mxu0 0
    %962 = vmatprep.subr.bf16.mxu0 0
    %963 = vmatpush1.bf16.msra.mxu0 0
    %964 = vmatprep.subr.bf16.mxu0 0
    %965 = vmatpush1.bf16.msra.mxu0 0
    %966 = vmatprep.subr.bf16.mxu0 0
    %967 = vmatpush1.bf16.msra.mxu0 0
    %968 = vmatprep.subr.bf16.mxu0 0
    %969 = vmatpush1.bf16.msra.mxu0 0
    %970 = vmatprep.subr.bf16.mxu0 0
    %971 = vmatpush1.bf16.msra.mxu0 0
    %972 = vmatprep.subr.bf16.mxu0 0
    %973 = vmatpush1.bf16.msra.mxu0 0
    %974 = vmatprep.subr.bf16.mxu0 0
    %975 = vmatpush1.bf16.msra.mxu0 0
    %976 = vmatprep.subr.bf16.mxu0 0
    %977 = vmatpush1.bf16.msra.mxu0 0
    %978 = vmatprep.subr.bf16.mxu0 0
    %979 = vmatpush1.bf16.msra.mxu0 0
    %980 = vmatprep.subr.bf16.mxu0 0
    %981 = vmatpush1.bf16.msra.mxu0 0
    %982 = vmatprep.subr.bf16.mxu0 0
    %983 = vmatpush1.bf16.msra.mxu0 0
    %984 = vmatprep.subr.bf16.mxu0 0
    %985 = vmatpush1.bf16.msra.mxu0 0
    %986 = vmatprep.subr.bf16.mxu0 0
    %987 = vmatpush1.bf16.msra.mxu0 0
    %988 = vmatprep.mubr.bf16.mxu0 0
    %989 = vmatmul.mubr.bf16.gmra.mrb[0].mxu0 %v924
    %v990 = vpop.f32.mrb[0].mxu0
    %v991 = vadd.f32 0.0, %v990
    %v992 = vpop.f32.mrb[0].mxu0
    %v993 = vpop.f32.mrb[0].mxu0
    %v994 = vadd.f32 0.0, %v993
    %v995 = vpop.f32.mrb[0].mxu0
    %996 = vmatprep.mubr.bf16.mxu0 0
    %997 = vmatmul.mubr.bf16.gmra.mrb[0].mxu0 %v927
    %v998 = vpop.f32.mrb[0].mxu0
    %v999 = vadd.f32 0.0, %v998
    %v1000 = vpop.f32.mrb[0].mxu0
    %v1001 = vpop.f32.mrb[0].mxu0
    %v1002 = vadd.f32 0.0, %v1001
    %v1003 = vpop.f32.mrb[0].mxu0
    %1004 = vmatprep.mubr.bf16.mxu0 0
    %1005 = vmatmul.mubr.bf16.gmra.mrb[0].mxu0 %v930
    %v1006 = vpop.f32.mrb[0].mxu0
    %v1007 = vadd.f32 0.0, %v1006
    %v1008 = vpop.f32.mrb[0].mxu0
    %v1009 = vpop.f32.mrb[0].mxu0
    %v1010 = vadd.f32 0.0, %v1009
    %v1011 = vpop.f32.mrb[0].mxu0
    %1012 = vmatprep.mubr.bf16.mxu0 0
    %1013 = vmatmul.mubr.bf16.gmra.mrb[0].mxu0 %v933
    %v1014 = vpop.f32.mrb[0].mxu0
    %v1015 = vadd.f32 0.0, %v1014
    %v1016 = vpop.f32.mrb[0].mxu0
    %v1017 = vpop.f32.mrb[0].mxu0
    %v1018 = vadd.f32 0.0, %v1017
    %v1019 = vpop.f32.mrb[0].mxu0
    %1020 = vmatprep.mubr.bf16.mxu0 0
    %1021 = vmatmul.mubr.bf16.gmra.mrb[0].mxu0 %v936
    %v1022 = vpop.f32.mrb[0].mxu0
    %v1023 = vadd.f32 0.0, %v1022
    %v1024 = vpop.f32.mrb[0].mxu0
    %v1025 = vpop.f32.mrb[0].mxu0
    %v1026 = vadd.f32 0.0, %v1025
    %v1027 = vpop.f32.mrb[0].mxu0
    %1028 = vmatprep.mubr.bf16.mxu0 0
    %1029 = vmatmul.mubr.bf16.gmra.mrb[0].mxu0 %v939
    %v1030 = vpop.f32.mrb[0].mxu0
    %v1031 = vadd.f32 0.0, %v1030
    %v1032 = vpop.f32.mrb[0].mxu0
    %v1033 = vpop.f32.mrb[0].mxu0
    %v1034 = vadd.f32 0.0, %v1033
    %v1035 = vpop.f32.mrb[0].mxu0
    %1036 = vmatprep.mubr.bf16.mxu0 0
    %1037 = vmatmul.mubr.bf16.gmra.mrb[0].mxu0 %v942
    %v1038 = vpop.f32.mrb[0].mxu0
    %v1039 = vadd.f32 0.0, %v1038
    %v1040 = vpop.f32.mrb[0].mxu0
    %v1041 = vpop.f32.mrb[0].mxu0
    %v1042 = vadd.f32 0.0, %v1041
    %v1043 = vpop.f32.mrb[0].mxu0
    %1044 = vmatprep.mubr.bf16.mxu0 0
    %1045 = vmatmul.mubr.bf16.gmra.mrb[0].mxu0 %v945
    %v1046 = vpop.f32.mrb[0].mxu0
    %v1047 = vadd.f32 0.0, %v1046
    %v1048 = vpop.f32.mrb[0].mxu0
    %v1049 = vpop.f32.mrb[0].mxu0
    %v1050 = vadd.f32 0.0, %v1049
    %v1051 = vpop.f32.mrb[0].mxu0
    %1052 = vmatprep.mubr.bf16.mxu0 0
    %1053 = vmatmul.mubr.bf16.gmra.mrb[0].mxu0 %v948
    %v1054 = vpop.f32.mrb[0].mxu0
    %v1055 = vadd.f32 0.0, %v1054
    %v1056 = vpop.f32.mrb[0].mxu0
    %v1057 = vpop.f32.mrb[0].mxu0
    %v1058 = vadd.f32 0.0, %v1057
    %v1059 = vpop.f32.mrb[0].mxu0
    %1060 = vmatprep.mubr.bf16.mxu0 0
    %1061 = vmatmul.mubr.bf16.gmra.mrb[0].mxu0 %v951
    %v1062 = vpop.f32.mrb[0].mxu0
    %v1063 = vadd.f32 0.0, %v1062
    %v1064 = vpop.f32.mrb[0].mxu0
    %v1065 = vpop.f32.mrb[0].mxu0
    %v1066 = vadd.f32 0.0, %v1065
    %v1067 = vpop.f32.mrb[0].mxu0
    %1068 = vmatprep.mubr.bf16.mxu0 0
    %1069 = vmatmul.mubr.bf16.gmra.mrb[0].mxu0 %v954
    %v1070 = vpop.f32.mrb[0].mxu0
    %v1071 = vadd.f32 0.0, %v1070
    %v1072 = vpop.f32.mrb[0].mxu0
    %v1073 = vpop.f32.mrb[0].mxu0
    %v1074 = vadd.f32 0.0, %v1073
    %v1075 = vpop.f32.mrb[0].mxu0
    %1076 = vdwg.mxu0
    %v1077 = vadd.f32 %v856, %v991
    %v1078 = vadd.f32 %v857, %v994
    %v1079 = vadd.f32 %v858, %v999
    %v1080 = vadd.f32 %v859, %v1002
    %v1081 = vadd.f32 %v860, %v1007
    %v1082 = vadd.f32 %v861, %v1010
    %v1083 = vadd.f32 %v862, %v1015
    %v1084 = vadd.f32 %v863, %v1018
    %v1085 = vadd.f32 %v864, %v1023
    %v1086 = vadd.f32 %v865, %v1026
    %v1087 = vadd.f32 %v866, %v1031
    %v1088 = vadd.f32 %v867, %v1034
    %v1089 = vadd.f32 %v868, %v1039
    %v1090 = vadd.f32 %v869, %v1042
    %v1091 = vadd.f32 %v870, %v1047
    %v1092 = vadd.f32 %v871, %v1050
    %v1093 = vadd.f32 %v872, %v1055
    %v1094 = vadd.f32 %v873, %v1058
    %v1095 = vadd.f32 %v874, %v1063
    %v1096 = vadd.f32 %v875, %v1066
    %v1097 = vadd.f32 %v876, %v1071
    %v1098 = vadd.f32 %v877, %v1074
    %v1099 = vpack.c.bf16 %v1078, %v1077
    %v1100 = vpack.c.bf16 %v1080, %v1079
    %v1101 = vpack.c.bf16 %v1082, %v1081
    %v1102 = vpack.c.bf16 %v1084, %v1083
    %v1103 = vpack.c.bf16 %v1086, %v1085
    %v1104 = vpack.c.bf16 %v1088, %v1087
    %v1105 = vpack.c.bf16 %v1090, %v1089
    %v1106 = vpack.c.bf16 %v1092, %v1091
    %v1107 = vpack.c.bf16 %v1094, %v1093
    %v1108 = vpack.c.bf16 %v1096, %v1095
    %v1109 = vpack.c.bf16 %v1098, %v1097
    %v1121 = vunpack.c.l.b16 %v1099
    %v1122 = vunpack.c.h.b16 %v1099
    %v1123 = vunpack.c.l.b16 %v1100
    %v1124 = vunpack.c.h.b16 %v1100
    %v1125 = vunpack.c.l.b16 %v1101
    %v1126 = vunpack.c.h.b16 %v1101
    %v1127 = vunpack.c.l.b16 %v1102
    %v1128 = vunpack.c.h.b16 %v1102
    %v1129 = vunpack.c.l.b16 %v1103
    %v1130 = vunpack.c.h.b16 %v1103
    %v1131 = vunpack.c.l.b16 %v1104
    %v1132 = vunpack.c.h.b16 %v1104
    %v1133 = vunpack.c.l.b16 %v1105
    %v1134 = vunpack.c.h.b16 %v1105
    %v1135 = vunpack.c.l.b16 %v1106
    %v1136 = vunpack.c.h.b16 %v1106
    %v1137 = vunpack.c.l.b16 %v1107
    %v1138 = vunpack.c.h.b16 %v1107
    %v1139 = vunpack.c.l.b16 %v1108
    %v1140 = vunpack.c.h.b16 %v1108
    %v1141 = vunpack.c.l.b16 %v1109
    %v1142 = vunpack.c.h.b16 %v1109
    %v1143 = vpack.c.b16 %v1121, %v1121
    %v1144 = vpack.c.b16 %v1122, %v1122
    %v1145 = vpack.c.b16 %v1123, %v1123
    %v1146 = vpack.c.b16 %v1124, %v1124
    %v1147 = vpack.c.b16 %v1125, %v1125
    %v1148 = vpack.c.b16 %v1126, %v1126
    %v1149 = vpack.c.b16 %v1127, %v1127
    %v1150 = vpack.c.b16 %v1128, %v1128
    %v1151 = vpack.c.b16 %v1129, %v1129
    %v1152 = vpack.c.b16 %v1130, %v1130
    %v1153 = vpack.c.b16 %v1131, %v1131
    %v1154 = vpack.c.b16 %v1132, %v1132
    %v1155 = vpack.c.b16 %v1133, %v1133
    %v1156 = vpack.c.b16 %v1134, %v1134
    %v1157 = vpack.c.b16 %v1135, %v1135
    %v1158 = vpack.c.b16 %v1136, %v1136
    %v1159 = vpack.c.b16 %v1137, %v1137
    %v1160 = vpack.c.b16 %v1138, %v1138
    %v1161 = vpack.c.b16 %v1139, %v1139
    %v1162 = vpack.c.b16 %v1140, %v1140
    %v1163 = vpack.c.b16 %v1141, %v1141
    %v1164 = vpack.c.b16 %v1142, %v1142
    %1187 = vst [vmem:[#allocation2] sm:$0xf] %v1143
    %1188 = vst [vmem:[#allocation2 + $0x4] sm:$0xf] %v1144
    %1189 = vst [vmem:[#allocation2 + $0x8] sm:$0xf] %v1145
    %1190 = vst [vmem:[#allocation2 + $0xc] sm:$0xf] %v1146
    %1191 = vst [vmem:[#allocation2 + $0x10] sm:$0xf] %v1147
    %1192 = vst [vmem:[#allocation2 + $0x14] sm:$0xf] %v1148
    %1193 = vst [vmem:[#allocation2 + $0x18] sm:$0xf] %v1149
    %1194 = vst [vmem:[#allocation2 + $0x1c] sm:$0xf] %v1150
    %1195 = vst [vmem:[#allocation2 + $0x20] sm:$0xf] %v1151
    %1196 = vst [vmem:[#allocation2 + $0x24] sm:$0xf] %v1152
    %1197 = vst [vmem:[#allocation2 + $0x28] sm:$0xf] %v1153
    %1198 = vst [vmem:[#allocation2 + $0x2c] sm:$0xf] %v1154
    %1199 = vst [vmem:[#allocation2 + $0x30] sm:$0xf] %v1155
    %1200 = vst [vmem:[#allocation2 + $0x34] sm:$0xf] %v1156
    %1201 = vst [vmem:[#allocation2 + $0x38] sm:$0xf] %v1157
    %1202 = vst [vmem:[#allocation2 + $0x3c] sm:$0xf] %v1158
    %1203 = vst [vmem:[#allocation2 + $0x40] sm:$0xf] %v1159
    %1204 = vst [vmem:[#allocation2 + $0x44] sm:$0xf] %v1160
    %1205 = vst [vmem:[#allocation2 + $0x48] sm:$0xf] %v1161
    %1206 = vst [vmem:[#allocation2 + $0x4c] sm:$0xf] %v1162
    %1207 = vst [vmem:[#allocation2 + $0x50] sm:$0xf] %v1163
    %1208 = vst [vmem:[#allocation2 + $0x54] sm:$0xf] %v1164
    %v1209 = vld [vmem:[%s3] sm:$0xff]
    %v1210 = vld [vmem:[%s3 + $0x8] sm:$0xff]
    %v1211 = vld [vmem:[%s3 + $0x10] sm:$0xff]
    %v1212 = vld [vmem:[%s3 + $0x18] sm:$0xff]
    %v1213 = vld [vmem:[%s3 + $0x20] sm:$0xff]
    %v1214 = vld [vmem:[%s3 + $0x28] sm:$0xff]
    %v1215 = vld [vmem:[%s3 + $0x30] sm:$0xff]
    %v1216 = vld [vmem:[%s3 + $0x38] sm:$0xff]
    %v1217 = vld [vmem:[%s3 + $0x40] sm:$0xff]
    %v1218 = vld [vmem:[%s3 + $0x48] sm:$0xff]
    %v1219 = vld [vmem:[%s3 + $0x50] sm:$0xff]
    %v1220 = vld [vmem:[%s3 + $0x58] sm:$0xff]
    %v1221 = vld [vmem:[%s3 + $0x60] sm:$0xff]
    %v1222 = vld [vmem:[%s3 + $0x68] sm:$0xff]
    %v1223 = vld [vmem:[%s3 + $0x70] sm:$0xff]
    %v1224 = vld [vmem:[%s3 + $0x78] sm:$0xff]
    %v1225 = vld [vmem:[%s3 + $0x80] sm:$0xff]
    %v1226 = vld [vmem:[%s3 + $0x88] sm:$0xff]
    %v1227 = vld [vmem:[%s3 + $0x90] sm:$0xff]
    %v1228 = vld [vmem:[%s3 + $0x98] sm:$0xff]
    %v1229 = vld [vmem:[%s3 + $0xa0] sm:$0xff]
    %v1230 = vld [vmem:[%s3 + $0xa8] sm:$0xff]
    %1232 = vset.pattern.permute.xlu0 0
    %1233 = vperm.xlu0 %1232, %v1209
    %v1234 = vpop.permute.xlu0 %1233
    %1237 = vset.pattern.permute.xlu0 0
    %1238 = vperm.xlu0 %1237, %v1210
    %v1239 = vpop.permute.xlu0 %1238
    %1242 = vset.pattern.permute.xlu0 0
    %1243 = vperm.xlu0 %1242, %v1211
    %v1244 = vpop.permute.xlu0 %1243
    %1247 = vset.pattern.permute.xlu0 0
    %1248 = vperm.xlu0 %1247, %v1212
    %v1249 = vpop.permute.xlu0 %1248
    %1252 = vset.pattern.permute.xlu0 0
    %1253 = vperm.xlu0 %1252, %v1213
    %v1254 = vpop.permute.xlu0 %1253
    %1257 = vset.pattern.permute.xlu0 0
    %1258 = vperm.xlu0 %1257, %v1214
    %v1259 = vpop.permute.xlu0 %1258
    %1262 = vset.pattern.permute.xlu0 0
    %1263 = vperm.xlu0 %1262, %v1215
    %v1264 = vpop.permute.xlu0 %1263
    %1267 = vset.pattern.permute.xlu0 0
    %1268 = vperm.xlu0 %1267, %v1216
    %v1269 = vpop.permute.xlu0 %1268
    %1272 = vset.pattern.permute.xlu0 0
    %1273 = vperm.xlu0 %1272, %v1217
    %v1274 = vpop.permute.xlu0 %1273
    %1277 = vset.pattern.permute.xlu0 0
    %1278 = vperm.xlu0 %1277, %v1218
    %v1279 = vpop.permute.xlu0 %1278
    %1282 = vset.pattern.permute.xlu0 0
    %1283 = vperm.xlu0 %1282, %v1219
    %v1284 = vpop.permute.xlu0 %1283
    %1287 = vset.pattern.permute.xlu0 0
    %1288 = vperm.xlu0 %1287, %v1220
    %v1289 = vpop.permute.xlu0 %1288
    %1292 = vset.pattern.permute.xlu0 0
    %1293 = vperm.xlu0 %1292, %v1221
    %v1294 = vpop.permute.xlu0 %1293
    %1297 = vset.pattern.permute.xlu0 0
    %1298 = vperm.xlu0 %1297, %v1222
    %v1299 = vpop.permute.xlu0 %1298
    %1302 = vset.pattern.permute.xlu0 0
    %1303 = vperm.xlu0 %1302, %v1223
    %v1304 = vpop.permute.xlu0 %1303
    %1307 = vset.pattern.permute.xlu0 0
    %1308 = vperm.xlu0 %1307, %v1224
    %v1309 = vpop.permute.xlu0 %1308
    %1312 = vset.pattern.permute.xlu0 0
    %1313 = vperm.xlu0 %1312, %v1225
    %v1314 = vpop.permute.xlu0 %1313
    %1317 = vset.pattern.permute.xlu0 0
    %1318 = vperm.xlu0 %1317, %v1226
    %v1319 = vpop.permute.xlu0 %1318
    %1322 = vset.pattern.permute.xlu0 0
    %1323 = vperm.xlu0 %1322, %v1227
    %v1324 = vpop.permute.xlu0 %1323
    %1327 = vset.pattern.permute.xlu0 0
    %1328 = vperm.xlu0 %1327, %v1228
    %v1329 = vpop.permute.xlu0 %1328
    %1332 = vset.pattern.permute.xlu0 0
    %1333 = vperm.xlu0 %1332, %v1229
    %v1334 = vpop.permute.xlu0 %1333
    %1337 = vset.pattern.permute.xlu0 0
    %1338 = vperm.xlu0 %1337, %v1230
    %v1339 = vpop.permute.xlu0 %1338
    %v1341 = vmul.f32 %v1077, %v1234
    %v1342 = vmul.f32 %v1078, %v1239
    %v1343 = vmul.f32 %v1079, %v1244
    %v1344 = vmul.f32 %v1080, %v1249
    %v1345 = vmul.f32 %v1081, %v1254
    %v1346 = vmul.f32 %v1082, %v1259
    %v1347 = vmul.f32 %v1083, %v1264
    %v1348 = vmul.f32 %v1084, %v1269
    %v1349 = vmul.f32 %v1085, %v1274
    %v1350 = vmul.f32 %v1086, %v1279
    %v1351 = vmul.f32 %v1087, %v1284
    %v1352 = vmul.f32 %v1088, %v1289
    %v1353 = vmul.f32 %v1089, %v1294
    %v1354 = vmul.f32 %v1090, %v1299
    %v1355 = vmul.f32 %v1091, %v1304
    %v1356 = vmul.f32 %v1092, %v1309
    %v1357 = vmul.f32 %v1093, %v1314
    %v1358 = vmul.f32 %v1094, %v1319
    %v1359 = vmul.f32 %v1095, %v1324
    %v1360 = vmul.f32 %v1096, %v1329
    %v1361 = vmul.f32 %v1097, %v1334
    %v1362 = vmul.f32 %v1098, %v1339
    %v1363 = vadd.f32 %v1341, %v1342
    %v1364 = vadd.f32 %v1363, %v1343
    %v1365 = vadd.f32 %v1364, %v1344
    %v1366 = vadd.f32 %v1365, %v1345
    %v1367 = vadd.f32 %v1366, %v1346
    %v1368 = vadd.f32 %v1367, %v1347
    %v1369 = vadd.f32 %v1368, %v1348
    %v1370 = vadd.f32 %v1369, %v1349
    %v1371 = vadd.f32 %v1370, %v1350
    %v1372 = vadd.f32 %v1371, %v1351
    %v1373 = vadd.f32 %v1372, %v1352
    %v1374 = vadd.f32 %v1373, %v1353
    %v1375 = vadd.f32 %v1374, %v1354
    %v1376 = vadd.f32 %v1375, %v1355
    %v1377 = vadd.f32 %v1376, %v1356
    %v1378 = vadd.f32 %v1377, %v1357
    %v1379 = vadd.f32 %v1378, %v1358
    %v1380 = vadd.f32 %v1379, %v1359
    %v1381 = vadd.f32 %v1380, %v1360
    %v1382 = vadd.f32 %v1381, %v1361
    %v1383 = vadd.f32 %v1382, %v1362
    %v1384 = vrot.slane %v1383, 4
    %v1385 = vadd.f32 %v1383, %v1384
    %v1386 = vrot.slane %v1385, 2
    %v1387 = vadd.f32 %v1385, %v1386
    %v1388 = vrot.slane %v1387, 1
    %v1389 = vadd.f32 %v1387, %v1388
    %v1390 = vmul.f32 %v1341, %v1077
    %v1391 = vmul.f32 %v1342, %v1078
    %v1392 = vmul.f32 %v1343, %v1079
    %v1393 = vmul.f32 %v1344, %v1080
    %v1394 = vmul.f32 %v1345, %v1081
    %v1395 = vmul.f32 %v1346, %v1082
    %v1396 = vmul.f32 %v1347, %v1083
    %v1397 = vmul.f32 %v1348, %v1084
    %v1398 = vmul.f32 %v1349, %v1085
    %v1399 = vmul.f32 %v1350, %v1086
    %v1400 = vmul.f32 %v1351, %v1087
    %v1401 = vmul.f32 %v1352, %v1088
    %v1402 = vmul.f32 %v1353, %v1089
    %v1403 = vmul.f32 %v1354, %v1090
    %v1404 = vmul.f32 %v1355, %v1091
    %v1405 = vmul.f32 %v1356, %v1092
    %v1406 = vmul.f32 %v1357, %v1093
    %v1407 = vmul.f32 %v1358, %v1094
    %v1408 = vmul.f32 %v1359, %v1095
    %v1409 = vmul.f32 %v1360, %v1096
    %v1410 = vmul.f32 %v1361, %v1097
    %v1411 = vmul.f32 %v1362, %v1098
    %v1412 = vadd.f32 %v1390, %v1391
    %v1413 = vadd.f32 %v1412, %v1392
    %v1414 = vadd.f32 %v1413, %v1393
    %v1415 = vadd.f32 %v1414, %v1394
    %v1416 = vadd.f32 %v1415, %v1395
    %v1417 = vadd.f32 %v1416, %v1396
    %v1418 = vadd.f32 %v1417, %v1397
    %v1419 = vadd.f32 %v1418, %v1398
    %v1420 = vadd.f32 %v1419, %v1399
    %v1421 = vadd.f32 %v1420, %v1400
    %v1422 = vadd.f32 %v1421, %v1401
    %v1423 = vadd.f32 %v1422, %v1402
    %v1424 = vadd.f32 %v1423, %v1403
    %v1425 = vadd.f32 %v1424, %v1404
    %v1426 = vadd.f32 %v1425, %v1405
    %v1427 = vadd.f32 %v1426, %v1406
    %v1428 = vadd.f32 %v1427, %v1407
    %v1429 = vadd.f32 %v1428, %v1408
    %v1430 = vadd.f32 %v1429, %v1409
    %v1431 = vadd.f32 %v1430, %v1410
    %v1432 = vadd.f32 %v1431, %v1411
    %v1433 = vrot.slane %v1432, 4
    %v1434 = vadd.f32 %v1432, %v1433
    %v1435 = vrot.slane %v1434, 2
    %v1436 = vadd.f32 %v1434, %v1435
    %v1437 = vrot.slane %v1436, 1
    %v1438 = vadd.f32 %v1436, %v1437
    %v1439 = vlaneseq
    %v1440 = vshrl.u32 %v1439, 7
    %vm1441 = vcmp.eq.s32.totalorder %v1440, 0
    %vm1442 = vcmp.eq.s32.totalorder %v1440, 1
    %v1443 = vsel %vm1442, %v1438, 0.0
    %v1444 = vsel %vm1441, %v1389, %v1443
    %1445 = vst [vmem:[#allocation4] sm:$0xff] %v1444
    // Predicated region
    $region18: #{tpu_custom_call.1} parent=1 // pred_check
      _
    $region19: #{tpu_custom_call.1} parent=1 // pred_check_branch
      %1447 = sbr.rel (0) target = $region21
    $region20: #{tpu_custom_call.1} parent=1 // pred_region
      %s1449 = ssub.s32 1408, 1408
      %1450 = vsyncadd [#allocation3], %s1449
      %s1451 = sshll.u32 [#allocation2], 4
      %s1452 = int_to_ptr.vmem [resolvable:$true] %s1451
      %1457 = dma.vmem_to_hbm [thread:$0]  %s1452, 1408, %s4, [#allocation3], 64, 64, 4
    $region21: #{tpu_custom_call.1} parent=1 // pred_fallthru
      _
    // Predicated region
    $region22: #{tpu_custom_call.1} parent=1 // pred_check
      _
    $region23: #{tpu_custom_call.1} parent=1 // pred_check_branch
      %1459 = sbr.rel (0) target = $region25
    $region24: #{tpu_custom_call.1} parent=1 // pred_region
      %s1461 = ssub.s32 128, 128
      %1462 = vsyncadd [#allocation5], %s1461
      %s1464 = sshll.u32 [#allocation4], 4
      %s1465 = int_to_ptr.vmem [resolvable:$true] %s1464
      %1467 = dma.vmem_to_hbm [thread:$0]  %s1465, 128, %s5, [#allocation5]
    $region25: #{tpu_custom_call.1} parent=1 // pred_fallthru
      _
    // Predicated region
    $region26: #{tpu_custom_call.1} parent=1 // pred_check
      _
    $region27: #{tpu_custom_call.1} parent=1 // pred_check_branch
      %1469 = sbr.rel (0) target = $region29
    $region28: #{tpu_custom_call.1} parent=1 // pred_region
      %1470 = dma.done [#allocation3], 1408
    $region29: #{tpu_custom_call.1} parent=1 // pred_fallthru
      _
    // Predicated region
    $region30: #{tpu_custom_call.1} parent=1 // pred_check
      _
    $region31: #{tpu_custom_call.1} parent=1 // pred_check_branch
      %1472 = sbr.rel (0) target = $region33
    $region32: #{tpu_custom_call.1} parent=1 // pred_region
      %1473 = dma.done [#allocation5], 128
    $region33: #{tpu_custom_call.1} parent=1 // pred_fallthru
      _
    %1474 = vsyncpa [#allocation3], 1
    %1475 = vsyncpa [#allocation5], 1

</llo_original>
